<compile_context>
chip_gen: v6e
topology: v6e:2x2x1
jax: 0.10.0
libtpu: 0.0.40
codegen_flags: <defaults>
</compile_context>

<pallas_src>
import jax
import jax.numpy as jnp
from jax.experimental import pallas as pl
from jax.experimental.pallas import tpu as pltpu

_LANE = 128


def _round_up(x, m):
    return ((x + m - 1) // m) * m


def _decoder_mlp_kernel(x_ref, w1_ref, b1_ref, w2_ref, b2_ref, o_ref):
    # hidden = ReLU(x @ W1 + b1); f32 accumulation + f32 epilogue.
    x = x_ref[...].astype(w1_ref.dtype)           # bf16-weight path if applicable
    h = jnp.dot(x, w1_ref[...], preferred_element_type=jnp.float32)
    h = jnp.maximum(h + b1_ref[...], 0.0)         # (tb, Hp) + (1, Hp)
    # out = hidden @ W2 + b2, written as a narrow (tb, latent) block (no lane pad).
    y = jnp.dot(h.astype(w2_ref.dtype), w2_ref[...],
                preferred_element_type=jnp.float32)
    o_ref[...] = (y + b2_ref[...]).astype(o_ref.dtype)


def pack_decoder_mlp_params(w1, b1, w2, b2):
    """One-time host-side packing.

    Only the hidden (contraction) dim is padded to a lane multiple:
      w1: (in, hidden)  -> (in, Hp)     Hp = round_up(hidden, 128)
      b1: (hidden,)     -> (1, Hp) f32
      w2: (hidden, lat) -> (Hp, lat)    latent is NOT padded (narrow output)
      b2: (latent,)     -> (1, lat) f32
    Zero-padded hidden columns stay zero through ReLU and contribute nothing.
    `in_features` is deliberately left unpadded (padding it would 8x the x read).
    """
    fin, hidden = w1.shape
    latent = w2.shape[1]
    hp = _round_up(hidden, _LANE)

    w1p = jnp.zeros((fin, hp), w1.dtype).at[:, :hidden].set(w1)
    b1p = jnp.zeros((1, hp), jnp.float32).at[0, :hidden].set(b1.astype(jnp.float32))
    w2p = jnp.zeros((hp, latent), w2.dtype).at[:hidden, :].set(w2)
    b2p = b2.astype(jnp.float32).reshape(1, latent)
    return w1p, b1p, w2p, b2p


def decoder_mlp(x, w1p, b1p, w2p, b2p, *, tile_b=2048):
    """x: (B, in_features); packed params from pack_decoder_mlp_params.

    Returns (B, latent), matching Linear -> ReLU -> Linear forward semantics.
    """
    B, fin = x.shape
    hp = w1p.shape[1]
    latent = w2p.shape[1]

    # Batch tile: multiple of 8 sublanes, no host-side padding of x; the ragged
    # last tile (if any) is clipped by Pallas.
    tb = _round_up(min(tile_b, B), 8)
    grid = (pl.cdiv(B, tb),)

    itemsize = x.dtype.itemsize
    flops = 2 * B * (fin * hp + hp * latent)
    bytes_accessed = (B * fin * itemsize                     # x read
                      + B * latent * itemsize                # out write
                      + w1p.size * w1p.dtype.itemsize
                      + w2p.size * w2p.dtype.itemsize
                      + b1p.size * 4 + b2p.size * 4)

    out = pl.pallas_call(
        _decoder_mlp_kernel,
        out_shape=jax.ShapeDtypeStruct((B, latent), x.dtype),
        grid=grid,
        in_specs=[
            pl.BlockSpec((tb, fin), lambda i: (i, 0)),       # x: streamed per tile
            pl.BlockSpec((fin, hp), lambda i: (0, 0)),       # w1: VMEM-resident
            pl.BlockSpec((1, hp), lambda i: (0, 0)),         # b1: VMEM-resident
            pl.BlockSpec((hp, latent), lambda i: (0, 0)),    # w2: VMEM-resident
            pl.BlockSpec((1, latent), lambda i: (0, 0)),     # b2: VMEM-resident
        ],
        out_specs=pl.BlockSpec((tb, latent), lambda i: (i, 0)),  # narrow store
        compiler_params=pltpu.CompilerParams(
            dimension_semantics=("parallel",),               # v7x: 2 TCs split tiles
        ),
        cost_estimate=pl.CostEstimate(
            flops=flops, transcendentals=0, bytes_accessed=bytes_accessed),
    )(x, w1p, b1p, w2p, b2p)
    return out


if __name__ == "__main__":
    # Small shapes consistent with DecoderMLP; batch chosen so the grid has >1
    # tile AND a ragged last tile (exercises the no-pad / clipped-tile path).
    batch = 100
    in_features = 16
    hidden_dim = 32
    latent_dim = 8

    key = jax.random.PRNGKey(0)
    kx, kw1, kb1, kw2, kb2 = jax.random.split(key, 5)

    x = jax.random.normal(kx, (batch, in_features), dtype=jnp.float32)

    # torch.nn.Linear-style uniform init, weights stored as (in, out).
    lim1 = 1.0 / jnp.sqrt(in_features)
    w1 = jax.random.uniform(kw1, (in_features, hidden_dim),
                            minval=-lim1, maxval=lim1, dtype=jnp.float32)
    b1 = jax.random.uniform(kb1, (hidden_dim,),
                            minval=-lim1, maxval=lim1, dtype=jnp.float32)

    lim2 = 1.0 / jnp.sqrt(hidden_dim)
    w2 = jax.random.uniform(kw2, (hidden_dim, latent_dim),
                            minval=-lim2, maxval=lim2, dtype=jnp.float32)
    b2 = jax.random.uniform(kb2, (latent_dim,),
                            minval=-lim2, maxval=lim2, dtype=jnp.float32)

    # One-time packing (hidden dim lane-padded only; latent left narrow).
    w1p, b1p, w2p, b2p = pack_decoder_mlp_params(w1, b1, w2, b2)

    out = decoder_mlp(x, w1p, b1p, w2p, b2p, tile_b=32)
    jax.block_until_ready(out)

    # Pure-JAX reference of the forward semantics (unpadded params).
    ref = jnp.maximum(x @ w1 + b1, 0.0) @ w2 + b2
    assert out.shape == (batch, latent_dim)
    assert jnp.allclose(out, ref, atol=1e-5, rtol=1e-5)

    print("KERNEL_OK")
</pallas_src>

<mosaic_0001>
module attributes {stable_mosaic.version = 11 : i64} {
  func.func @_decoder_mlp_kernel(%arg0: i32, %arg1: memref<32x16xf32, #tpu.memory_space<vmem>>, %arg2: memref<16x128xf32, #tpu.memory_space<vmem>>, %arg3: memref<1x128xf32, #tpu.memory_space<vmem>>, %arg4: memref<128x8xf32, #tpu.memory_space<vmem>>, %arg5: memref<1x8xf32, #tpu.memory_space<vmem>>, %arg6: memref<32x8xf32, #tpu.memory_space<vmem>>) attributes {dimension_semantics = [#tpu.dimension_semantics<parallel>], iteration_bounds = array<i64: 4>, scalar_prefetch = 0 : i64, scratch_operands = 0 : i64, tpu.core_type = #tpu.core_type<tc>, window_params = [{transform_indices = @transform_0, window_bounds = array<i64: 32, 16>}, {pipeline_mode = #tpu.pipeline_mode<synchronous>, transform_indices = @transform_1, window_bounds = array<i64: 16, 128>}, {pipeline_mode = #tpu.pipeline_mode<synchronous>, transform_indices = @transform_2, window_bounds = array<i64: 1, 128>}, {pipeline_mode = #tpu.pipeline_mode<synchronous>, transform_indices = @transform_3, window_bounds = array<i64: 128, 8>}, {pipeline_mode = #tpu.pipeline_mode<synchronous>, transform_indices = @transform_4, window_bounds = array<i64: 1, 8>}, {transform_indices = @transform_5, window_bounds = array<i64: 32, 8>}]} {
    %c0 = arith.constant 0 : index
    %c0_0 = arith.constant 0 : index
    %0 = vector.load %arg1[%c0, %c0_0] : memref<32x16xf32, #tpu.memory_space<vmem>>, vector<32x16xf32>
    %c0_1 = arith.constant 0 : index
    %c0_2 = arith.constant 0 : index
    %1 = vector.load %arg2[%c0_1, %c0_2] : memref<16x128xf32, #tpu.memory_space<vmem>>, vector<16x128xf32>
    %cst = arith.constant dense<0.000000e+00> : vector<32x128xf32>
    %2 = tpu.matmul %0, %1, %cst {dimension_numbers = #tpu.dot_dimension_numbers<[1], [0], [0], [1], [0, 0, 1, 1], [], []>} : vector<32x16xf32>, vector<16x128xf32>, vector<32x128xf32> -> vector<32x128xf32>
    %c0_3 = arith.constant 0 : index
    %c0_4 = arith.constant 0 : index
    %3 = vector.load %arg3[%c0_3, %c0_4] : memref<1x128xf32, #tpu.memory_space<vmem>>, vector<1x128xf32>
    %4 = vector.broadcast %3 : vector<1x128xf32> to vector<32x128xf32>
    %5 = arith.addf %2, %4 : vector<32x128xf32>
    %cst_5 = arith.constant 0.000000e+00 : f32
    %6 = vector.broadcast %cst_5 : f32 to vector<32x128xf32>
    %7 = arith.maximumf %5, %6 : vector<32x128xf32>
    %c0_6 = arith.constant 0 : index
    %c0_7 = arith.constant 0 : index
    %8 = vector.load %arg4[%c0_6, %c0_7] : memref<128x8xf32, #tpu.memory_space<vmem>>, vector<128x8xf32>
    %cst_8 = arith.constant dense<0.000000e+00> : vector<32x8xf32>
    %9 = tpu.matmul %7, %8, %cst_8 {dimension_numbers = #tpu.dot_dimension_numbers<[1], [0], [0], [1], [0, 0, 1, 1], [], []>} : vector<32x128xf32>, vector<128x8xf32>, vector<32x8xf32> -> vector<32x8xf32>
    %c0_9 = arith.constant 0 : index
    %c0_10 = arith.constant 0 : index
    %10 = vector.load %arg5[%c0_9, %c0_10] : memref<1x8xf32, #tpu.memory_space<vmem>>, vector<1x8xf32>
    %11 = vector.broadcast %10 : vector<1x8xf32> to vector<32x8xf32>
    %12 = arith.addf %9, %11 : vector<32x8xf32>
    %c0_11 = arith.constant 0 : index
    %c0_12 = arith.constant 0 : index
    %13 = vector.load %arg6[%c0_11, %c0_12] : memref<32x8xf32, #tpu.memory_space<vmem>>, vector<32x8xf32>
    tpu.vector_store %arg6[%c0_11, %c0_12], %12 {strides = array<i32>} : memref<32x8xf32, #tpu.memory_space<vmem>>, vector<32x8xf32>,
    return
  }
  func.func @transform_0(%arg0: i32) -> (i32, i32) {
    %c0_i32 = arith.constant 0 : i32
    %c0_i32_0 = arith.constant 0 : i32
    return %arg0, %c0_i32 : i32, i32
  }
  func.func @transform_1(%arg0: i32) -> (i32, i32) {
    %c0_i32 = arith.constant 0 : i32
    %c0_i32_0 = arith.constant 0 : i32
    %c0_i32_1 = arith.constant 0 : i32
    return %c0_i32, %c0_i32_0 : i32, i32
  }
  func.func @transform_2(%arg0: i32) -> (i32, i32) {
    %c0_i32 = arith.constant 0 : i32
    %c0_i32_0 = arith.constant 0 : i32
    %c0_i32_1 = arith.constant 0 : i32
    return %c0_i32, %c0_i32_0 : i32, i32
  }
  func.func @transform_3(%arg0: i32) -> (i32, i32) {
    %c0_i32 = arith.constant 0 : i32
    %c0_i32_0 = arith.constant 0 : i32
    %c0_i32_1 = arith.constant 0 : i32
    return %c0_i32, %c0_i32_0 : i32, i32
  }
  func.func @transform_4(%arg0: i32) -> (i32, i32) {
    %c0_i32 = arith.constant 0 : i32
    %c0_i32_0 = arith.constant 0 : i32
    %c0_i32_1 = arith.constant 0 : i32
    return %c0_i32, %c0_i32_0 : i32, i32
  }
  func.func @transform_5(%arg0: i32) -> (i32, i32) {
    %c0_i32 = arith.constant 0 : i32
    %c0_i32_0 = arith.constant 0 : i32
    return %arg0, %c0_i32 : i32, i32
  }
}

</mosaic_0001>

<llo_original>
// kernel: tpu_custom_call.1
$region0: #{tpu_custom_call.1}
  #allocation0 [shape = 'u32[]', space=smem, size = 0x4, offset = 0x4, fixed_abs, tag = 'smem constant byte address 0x4 - core index']
  #allocation1 [shape = 'u32[144,128]{1,0:T(1,128)}', space=vmem, size = 0x12000, scoped, tag = 'internal scratch']
  %s0 = inlined_call_operand.vmem [shape: f32[100,16], index: 0, kind: input, shape index: {}]
  %s1 = inlined_call_operand.vmem [shape: f32[16,128], index: 1, kind: input, shape index: {}]
  %s2 = inlined_call_operand.vmem [shape: f32[1,128], index: 2, kind: input, shape index: {}]
  %s3 = inlined_call_operand.vmem [shape: f32[128,8], index: 3, kind: input, shape index: {}]
  %s4 = inlined_call_operand.vmem [shape: f32[1,8], index: 4, kind: input, shape index: {}]
  %s5 = inlined_call_operand.vmem [shape: f32[100,8], index: 5, kind: output, shape index: {}]
  %s6 = sld [smem:[#allocation0]]
  $region101: #{tpu_custom_call.1} parent=0
    _
  %s8 = ssub.s32 1, %s6
  %s9 = scalar_select 0, %s8, %s6
  $region1: #{tpu_custom_call.1} parent=0
    #allocation2 [shape = 'u8[32768]{0}', space=vmem, size = 0x8000, scoped, tag = 'output window, operand 0']
    loop: start=0, step=1, limit=6
    $region2: #{tpu_custom_call.1} parent=1 // loop_pre_header
      _
    $region3: #{tpu_custom_call.1} parent=1 // loop_header
      %s11 = sphi 0, %s15
      %p12 = scmp.ge.s32.totalorder %s11, 6
      %s21 = sphi 0, %s23
      %s24 = sphi 0, %s21
      %s25 = sphi 0, %s24
      %s41 = sphi 0, %s25
      %s45 = sphi 0, %s45
      %s47 = sphi 0, %s45
      %s48 = sphi 0, %s47
      %s62 = sphi 0, %s48
      %s66 = sphi 0, %s66
      %s68 = sphi 0, %s66
      %s69 = sphi 0, %s68
      %s83 = sphi 0, %s69
      %s87 = sphi 0, %s87
      %s89 = sphi 0, %s87
      %s90 = sphi 0, %s89
      %s104 = sphi 0, %s90
      %s108 = sphi 0, %s108
      %s110 = sphi 0, %s108
      %s111 = sphi 0, %s110
      %s125 = sphi 0, %s111
      %s131 = sphi 0, %s133
      %s134 = sphi 0, %s131
      %s135 = sphi 0, %s134
      %s151 = sphi 0, %s135
    $region4: #{tpu_custom_call.1} parent=1 // loop_header_branch
      %14 = sbr.rel (%p12) target = $region8
    $region5: #{tpu_custom_call.1} parent=1 // loop_body
      %s16 = ssub.s32 %s11, 1
      %s17 = ssub.s32 %s11, 2
      %s18 = sadd.s32 %s11, 1
      %s19 = ssub.s32 %s11, %s18
      %p20 = scmp.eq.s32.totalorder %s19, 0
      %s22 = sadd.s32 %s21, 1
      %s23 = scalar_select %p20, %s21, %s22
      %p26 = pneg %p20
      %p27 = scmp.eq.s32.totalorder %s11, 3
      %p28 = por %p26, %p27
      %p29 = scmp.ne.s32.totalorder %s21, %s24
      %p30 = scmp.eq.s32.totalorder %s11, 0
      %p31 = por %p29, %p30
      %p32 = scmp.ne.s32.totalorder %s21, %s24
      %p33 = scmp.eq.s32.totalorder %s16, 3
      %p34 = por %p32, %p33
      %p35 = scmp.ne.s32.totalorder %s24, %s25
      %p36 = scmp.eq.s32.totalorder %s16, 0
      %p37 = por %p35, %p36
      %p38 = scmp.ne.s32.totalorder %s24, %s25
      %p39 = scmp.eq.s32.totalorder %s17, 3
      %p40 = por %p38, %p39
      %p42 = scmp.ne.s32.totalorder %s25, %s41
      %p43 = scmp.eq.s32.totalorder %s17, 0
      %p44 = por %p42, %p43
      %s46 = sadd.s32 %s45, 1
      %p49 = scmp.eq.s32.totalorder %s11, 3
      %p50 = scmp.ne.s32.totalorder %s45, %s47
      %p51 = scmp.eq.s32.totalorder %s11, 0
      %p52 = por %p50, %p51
      %p53 = scmp.ne.s32.totalorder %s45, %s47
      %p54 = scmp.eq.s32.totalorder %s16, 3
      %p55 = por %p53, %p54
      %p56 = scmp.ne.s32.totalorder %s47, %s48
      %p57 = scmp.eq.s32.totalorder %s16, 0
      %p58 = por %p56, %p57
      %p59 = scmp.ne.s32.totalorder %s47, %s48
      %p60 = scmp.eq.s32.totalorder %s17, 3
      %p61 = por %p59, %p60
      %p63 = scmp.ne.s32.totalorder %s48, %s62
      %p64 = scmp.eq.s32.totalorder %s17, 0
      %p65 = por %p63, %p64
      %s67 = sadd.s32 %s66, 1
      %p70 = scmp.eq.s32.totalorder %s11, 3
      %p71 = scmp.ne.s32.totalorder %s66, %s68
      %p72 = scmp.eq.s32.totalorder %s11, 0
      %p73 = por %p71, %p72
      %p74 = scmp.ne.s32.totalorder %s66, %s68
      %p75 = scmp.eq.s32.totalorder %s16, 3
      %p76 = por %p74, %p75
      %p77 = scmp.ne.s32.totalorder %s68, %s69
      %p78 = scmp.eq.s32.totalorder %s16, 0
      %p79 = por %p77, %p78
      %p80 = scmp.ne.s32.totalorder %s68, %s69
      %p81 = scmp.eq.s32.totalorder %s17, 3
      %p82 = por %p80, %p81
      %p84 = scmp.ne.s32.totalorder %s69, %s83
      %p85 = scmp.eq.s32.totalorder %s17, 0
      %p86 = por %p84, %p85
      %s88 = sadd.s32 %s87, 1
      %p91 = scmp.eq.s32.totalorder %s11, 3
      %p92 = scmp.ne.s32.totalorder %s87, %s89
      %p93 = scmp.eq.s32.totalorder %s11, 0
      %p94 = por %p92, %p93
      %p95 = scmp.ne.s32.totalorder %s87, %s89
      %p96 = scmp.eq.s32.totalorder %s16, 3
      %p97 = por %p95, %p96
      %p98 = scmp.ne.s32.totalorder %s89, %s90
      %p99 = scmp.eq.s32.totalorder %s16, 0
      %p100 = por %p98, %p99
      %p101 = scmp.ne.s32.totalorder %s89, %s90
      %p102 = scmp.eq.s32.totalorder %s17, 3
      %p103 = por %p101, %p102
      %p105 = scmp.ne.s32.totalorder %s90, %s104
      %p106 = scmp.eq.s32.totalorder %s17, 0
      %p107 = por %p105, %p106
      %s109 = sadd.s32 %s108, 1
      %p112 = scmp.eq.s32.totalorder %s11, 3
      %p113 = scmp.ne.s32.totalorder %s108, %s110
      %p114 = scmp.eq.s32.totalorder %s11, 0
      %p115 = por %p113, %p114
      %p116 = scmp.ne.s32.totalorder %s108, %s110
      %p117 = scmp.eq.s32.totalorder %s16, 3
      %p118 = por %p116, %p117
      %p119 = scmp.ne.s32.totalorder %s110, %s111
      %p120 = scmp.eq.s32.totalorder %s16, 0
      %p121 = por %p119, %p120
      %p122 = scmp.ne.s32.totalorder %s110, %s111
      %p123 = scmp.eq.s32.totalorder %s17, 3
      %p124 = por %p122, %p123
      %p126 = scmp.ne.s32.totalorder %s111, %s125
      %p127 = scmp.eq.s32.totalorder %s17, 0
      %p128 = por %p126, %p127
      %s129 = ssub.s32 %s11, %s18
      %p130 = scmp.eq.s32.totalorder %s129, 0
      %s132 = sadd.s32 %s131, 1
      %s133 = scalar_select %p130, %s131, %s132
      %p136 = pneg %p130
      %p137 = scmp.eq.s32.totalorder %s11, 3
      %p138 = por %p136, %p137
      %p139 = scmp.ne.s32.totalorder %s131, %s134
      %p140 = scmp.eq.s32.totalorder %s11, 0
      %p141 = por %p139, %p140
      %p142 = scmp.ne.s32.totalorder %s131, %s134
      %p143 = scmp.eq.s32.totalorder %s16, 3
      %p144 = por %p142, %p143
      %p145 = scmp.ne.s32.totalorder %s134, %s135
      %p146 = scmp.eq.s32.totalorder %s16, 0
      %p147 = por %p145, %p146
      %p148 = scmp.ne.s32.totalorder %s134, %s135
      %p149 = scmp.eq.s32.totalorder %s17, 3
      %p150 = por %p148, %p149
      %p152 = scmp.ne.s32.totalorder %s135, %s151
      %p153 = scmp.eq.s32.totalorder %s17, 0
      %p154 = por %p152, %p153
      %p155 = scmp.le.s32.totalorder 1, %s11
      %p156 = scmp.lt.s32.totalorder %s11, 5
      %p157 = pnand %p155, %p156
      %p158 = pneg %p157
      // Predicated region
      $region9: #{tpu_custom_call.1} parent=5 // pred_check
        _
      $region10: #{tpu_custom_call.1} parent=5 // pred_check_branch
        %160 = sbr.rel (%p157) target = $region12
      $region11: #{tpu_custom_call.1} parent=5 // pred_region
        %s161 = ssub.s32 %s11, 1
        // Predicated region
        $region13: #{tpu_custom_call.1} parent=11 // pred_check
          %p162 = pneg %p58
        $region14: #{tpu_custom_call.1} parent=11 // pred_check_branch
          %164 = sbr.rel (%p162) target = $region16
        $region15: #{tpu_custom_call.1} parent=11 // pred_region
          _
        $region16: #{tpu_custom_call.1} parent=11 // pred_fallthru
          _
        // Predicated region
        $region17: #{tpu_custom_call.1} parent=11 // pred_check
          %p165 = pneg %p79
        $region18: #{tpu_custom_call.1} parent=11 // pred_check_branch
          %167 = sbr.rel (%p165) target = $region20
        $region19: #{tpu_custom_call.1} parent=11 // pred_region
          _
        $region20: #{tpu_custom_call.1} parent=11 // pred_fallthru
          _
        // Predicated region
        $region21: #{tpu_custom_call.1} parent=11 // pred_check
          %p168 = pneg %p100
        $region22: #{tpu_custom_call.1} parent=11 // pred_check_branch
          %170 = sbr.rel (%p168) target = $region24
        $region23: #{tpu_custom_call.1} parent=11 // pred_region
          _
        $region24: #{tpu_custom_call.1} parent=11 // pred_fallthru
          _
        // Predicated region
        $region25: #{tpu_custom_call.1} parent=11 // pred_check
          %p171 = pneg %p121
        $region26: #{tpu_custom_call.1} parent=11 // pred_check_branch
          %173 = sbr.rel (%p171) target = $region28
        $region27: #{tpu_custom_call.1} parent=11 // pred_region
          _
        $region28: #{tpu_custom_call.1} parent=11 // pred_fallthru
          _
      $region12: #{tpu_custom_call.1} parent=5 // pred_fallthru
        _
      %p174 = scmp.lt.s32.totalorder %s11, 4
      // Predicated region
      $region29: #{tpu_custom_call.1} parent=5 // pred_check
        %p175 = pneg %p174
      $region30: #{tpu_custom_call.1} parent=5 // pred_check_branch
        %177 = sbr.rel (%p175) target = $region32
      $region31: #{tpu_custom_call.1} parent=5 // pred_region
        // Predicated region
        $region33: #{tpu_custom_call.1} parent=31 // pred_check
          %p178 = pneg %p31
        $region34: #{tpu_custom_call.1} parent=31 // pred_check_branch
          %180 = sbr.rel (%p178) target = $region36
        $region35: #{tpu_custom_call.1} parent=31 // pred_region
          %s181 = smul.u32 4, %s11
          %s182 = ssub.s32 13, %s181
          %p183 = scmp.lt.s32.totalorder %s182, 4
          %s184 = scalar_select %p183, %s182, 4
          %s185 = smul.u32 128, %s184
          %p186 = scmp.lt.s32.totalorder %s181, 12
          %s187 = scalar_select %p186, %s181, 12
          %s188 = smul.addr %s187, 8
          %s189 = scalar_lea.vmem %s0, %s188
          %s190 = smul.u32 4, %s11
          %s191 = ssub.s32 13, %s190
          %p192 = scmp.lt.s32.totalorder %s191, 4
          %s193 = scalar_select %p192, %s191, 4
          %s194 = smul.u32 128, %s193
        $region36: #{tpu_custom_call.1} parent=31 // pred_fallthru
          _
      $region32: #{tpu_custom_call.1} parent=5 // pred_fallthru
        _
      %p195 = scmp.le.s32.totalorder 1, %s11
      %p196 = scmp.lt.s32.totalorder %s11, 5
      %p197 = pnand %p195, %p196
      %p198 = pneg %p197
      // Predicated region
      $region37: #{tpu_custom_call.1} parent=5 // pred_check
        _
      $region38: #{tpu_custom_call.1} parent=5 // pred_check_branch
        %200 = sbr.rel (%p197) target = $region40
      $region39: #{tpu_custom_call.1} parent=5 // pred_region
        %s201 = ssub.s32 %s11, 1
        %s202 = smul.u32 4, %s16
        %s203 = ssub.s32 13, %s202
        %p204 = scmp.lt.s32.totalorder %s203, 4
        %s205 = scalar_select %p204, %s203, 4
        %s206 = smul.u32 128, %s205
        %p207 = scmp.lt.s32.totalorder %s202, 12
        %s208 = scalar_select %p207, %s202, 12
        %s209 = smul.addr %s208, 8
        %s210 = scalar_lea.vmem %s0, %s209
        %p211 = pneg %p37
        %p212 = pneg %p34
        %p213 = pneg %p58
        %p214 = pneg %p55
        %p215 = pneg %p79
        %p216 = pneg %p76
        %p217 = pneg %p100
        %p218 = pneg %p97
        %p219 = pneg %p121
        %p220 = pneg %p118
        %p221 = pneg %p147
        %p222 = pneg %p144
        %s223 = sand.u32 %s134, 1
        %s224 = sand.u32 %s134, 1
        %s225 = smul.addr %s224, 32
        %s226 = scalar_lea.vmem [#allocation2], %s225
        %s227 = smul.u32 4, %s16
        %s228 = ssub.s32 13, %s227
        %p229 = scmp.lt.s32.totalorder %s228, 4
        %s230 = scalar_select %p229, %s228, 4
        %s231 = smul.u32 128, %s230
        %p232 = scmp.lt.s32.totalorder %s227, 12
        %s233 = scalar_select %p232, %s227, 12
        %s234 = smul.addr %s233, 8
        %s235 = scalar_lea.vmem %s0, %s234
        %s236 = smul.u32 4, %s16
        %s237 = ssub.s32 13, %s236
        %p238 = scmp.lt.s32.totalorder %s237, 4
        %s239 = scalar_select %p238, %s237, 4
        %s240 = smul.u32 128, %s239
        %s241 = smul.u32 4, %s16
        %s242 = ssub.s32 13, %s241
        %p243 = scmp.lt.s32.totalorder %s242, 4
        %s244 = scalar_select %p243, %s242, 4
        %s245 = smul.u32 128, %s244
        %v246 = vld [vmem:[%s235] sm:$0xff]
        %v247 = vld [vmem:[%s235 + $0x8] sm:$0xff]
        %v248 = vld [vmem:[%s235 + $0x10] sm:$0xff]
        %v249 = vld [vmem:[%s235 + $0x18] sm:$0xff]
        %v250 = vld [vmem:[%s1] sm:$0xff]
        %v251 = vld [vmem:[%s1 + $0x8] sm:$0xff]
        %v252 = vld [vmem:[%s2] sm:$0x1]
        %v254 = vlaneseq
        %v255 = vshrl.u32 %v254, 7
        %v256 = vsub.s32 0, %v255
        %v257 = vrot.slane %v252, %v256
        %vm259 = vcmask 130048
        %v261 = vsel %vm259, %v246, 0
        %v264 = vsel %vm259, %v247, 0
        %v267 = vsel %vm259, %v248, 0
        %v270 = vsel %vm259, %v249, 0
        %272 = vmatprep.subr.mxu0 0.0
        %273 = vmatpush1.msra.mxu0 0.0
        %274 = vmatprep.subr.mxu0 0.0
        %275 = vmatpush1.msra.mxu0 0.0
        %276 = vmatprep.subr.mxu0 0.0
        %277 = vmatpush1.msra.mxu0 0.0
        %278 = vmatprep.subr.mxu0 0.0
        %279 = vmatpush1.msra.mxu0 0.0
        %280 = vmatprep.subr.mxu0 0.0
        %281 = vmatpush1.msra.mxu0 0.0
        %282 = vmatprep.subr.mxu0 0.0
        %283 = vmatpush1.msra.mxu0 0.0
        %284 = vmatprep.subr.mxu0 0.0
        %285 = vmatpush1.msra.mxu0 0.0
        %286 = vmatprep.subr.mxu0 0.0
        %287 = vmatpush1.msra.mxu0 0.0
        %288 = vmatprep.subr.mxu0 0.0
        %289 = vmatpush1.msra.mxu0 0.0
        %290 = vmatprep.subr.mxu0 0.0
        %291 = vmatpush1.msra.mxu0 0.0
        %292 = vmatprep.subr.mxu0 0.0
        %293 = vmatpush1.msra.mxu0 0.0
        %294 = vmatprep.subr.mxu0 0.0
        %295 = vmatpush1.msra.mxu0 0.0
        %296 = vmatprep.subr.mxu0 0.0
        %297 = vmatpush1.msra.mxu0 0.0
        %298 = vmatprep.subr.mxu0 0.0
        %299 = vmatpush1.msra.mxu0 0.0
        %300 = vmatprep.subr.mxu0 0.0
        %301 = vmatpush1.msra.mxu0 %v251
        %302 = vmatprep.subr.mxu0 0.0
        %303 = vmatpush1.msra.mxu0 %v250
        %304 = vmatprep.subr.mxu0 0.0
        %305 = vmatpush2.msra.mxu0 0.0
        %306 = vmatprep.subr.mxu0 0.0
        %307 = vmatpush2.msra.mxu0 0.0
        %308 = vmatprep.subr.mxu0 0.0
        %309 = vmatpush2.msra.mxu0 0.0
        %310 = vmatprep.subr.mxu0 0.0
        %311 = vmatpush2.msra.mxu0 0.0
        %312 = vmatprep.subr.mxu0 0.0
        %313 = vmatpush2.msra.mxu0 0.0
        %314 = vmatprep.subr.mxu0 0.0
        %315 = vmatpush2.msra.mxu0 0.0
        %316 = vmatprep.subr.mxu0 0.0
        %317 = vmatpush2.msra.mxu0 0.0
        %318 = vmatprep.subr.mxu0 0.0
        %319 = vmatpush2.msra.mxu0 0.0
        %320 = vmatprep.subr.mxu0 0.0
        %321 = vmatpush2.msra.mxu0 0.0
        %322 = vmatprep.subr.mxu0 0.0
        %323 = vmatpush2.msra.mxu0 0.0
        %324 = vmatprep.subr.mxu0 0.0
        %325 = vmatpush2.msra.mxu0 0.0
        %326 = vmatprep.subr.mxu0 0.0
        %327 = vmatpush2.msra.mxu0 0.0
        %328 = vmatprep.subr.mxu0 0.0
        %329 = vmatpush2.msra.mxu0 0.0
        %330 = vmatprep.subr.mxu0 0.0
        %331 = vmatpush2.msra.mxu0 0.0
        %332 = vmatprep.subr.mxu0 0.0
        %333 = vmatpush2.msra.mxu0 0.0
        %334 = vmatprep.subr.mxu0 0.0
        %335 = vmatpush2.msra.mxu0 0.0
        %336 = vmatprep.mubr.f32.mxu0 0.0
        %337 = vmatmul.mubr.f32.gmra.mxu0 %v261
        %v338 = vpop.f32.mrf.mxu0
        %v339 = vadd.f32 %v257, %v338
        %v340 = vpop.f32.mrf.mxu0
        %341 = vmatprep.mubr.f32.mxu0 0.0
        %342 = vmatmul.mubr.f32.gmra.mxu0 %v264
        %v343 = vpop.f32.mrf.mxu0
        %v344 = vadd.f32 %v257, %v343
        %v345 = vpop.f32.mrf.mxu0
        %346 = vmatprep.mubr.f32.mxu0 0.0
        %347 = vmatmul.mubr.f32.gmra.mxu0 %v267
        %v348 = vpop.f32.mrf.mxu0
        %v349 = vadd.f32 %v257, %v348
        %v350 = vpop.f32.mrf.mxu0
        %351 = vmatprep.mubr.f32.mxu0 0.0
        %352 = vmatmul.mubr.f32.gmra.mxu0 %v270
        %v353 = vpop.f32.mrf.mxu0
        %v354 = vadd.f32 %v257, %v353
        %v355 = vpop.f32.mrf.mxu0
        %356 = vdwg.mxu0
        %v357 = vmax.f32 %v339, 0.0
        %v358 = vmax.f32 %v344, 0.0
        %v359 = vmax.f32 %v349, 0.0
        %v360 = vmax.f32 %v354, 0.0
        %v361 = vld [vmem:[%s3] sm:$0xff]
        %v362 = vld [vmem:[%s3 + $0x8] sm:$0xff]
        %v363 = vld [vmem:[%s3 + $0x10] sm:$0xff]
        %v364 = vld [vmem:[%s3 + $0x18] sm:$0xff]
        %v365 = vld [vmem:[%s3 + $0x20] sm:$0xff]
        %v366 = vld [vmem:[%s3 + $0x28] sm:$0xff]
        %v367 = vld [vmem:[%s3 + $0x30] sm:$0xff]
        %v368 = vld [vmem:[%s3 + $0x38] sm:$0xff]
        %v369 = vld [vmem:[%s3 + $0x40] sm:$0xff]
        %v370 = vld [vmem:[%s3 + $0x48] sm:$0xff]
        %v371 = vld [vmem:[%s3 + $0x50] sm:$0xff]
        %v372 = vld [vmem:[%s3 + $0x58] sm:$0xff]
        %v373 = vld [vmem:[%s3 + $0x60] sm:$0xff]
        %v374 = vld [vmem:[%s3 + $0x68] sm:$0xff]
        %v375 = vld [vmem:[%s3 + $0x70] sm:$0xff]
        %v376 = vld [vmem:[%s3 + $0x78] sm:$0xff]
        %v377 = vld [vmem:[%s4] sm:$0x1]
        %v379 = vlaneseq
        %v380 = vshrl.u32 %v379, 7
        %v381 = vsub.s32 0, %v380
        %v382 = vrot.slane %v377, %v381
        %384 = vmatprep.subr.mxu0 0.0
        %385 = vmatpush1.msra.mxu0 %v376
        %386 = vmatprep.subr.mxu0 0.0
        %387 = vmatpush1.msra.mxu0 %v375
        %388 = vmatprep.subr.mxu0 0.0
        %389 = vmatpush1.msra.mxu0 %v374
        %390 = vmatprep.subr.mxu0 0.0
        %391 = vmatpush1.msra.mxu0 %v373
        %392 = vmatprep.subr.mxu0 0.0
        %393 = vmatpush1.msra.mxu0 %v372
        %394 = vmatprep.subr.mxu0 0.0
        %395 = vmatpush1.msra.mxu0 %v371
        %396 = vmatprep.subr.mxu0 0.0
        %397 = vmatpush1.msra.mxu0 %v370
        %398 = vmatprep.subr.mxu0 0.0
        %399 = vmatpush1.msra.mxu0 %v369
        %400 = vmatprep.subr.mxu0 0.0
        %401 = vmatpush1.msra.mxu0 %v368
        %402 = vmatprep.subr.mxu0 0.0
        %403 = vmatpush1.msra.mxu0 %v367
        %404 = vmatprep.subr.mxu0 0.0
        %405 = vmatpush1.msra.mxu0 %v366
        %406 = vmatprep.subr.mxu0 0.0
        %407 = vmatpush1.msra.mxu0 %v365
        %408 = vmatprep.subr.mxu0 0.0
        %409 = vmatpush1.msra.mxu0 %v364
        %410 = vmatprep.subr.mxu0 0.0
        %411 = vmatpush1.msra.mxu0 %v363
        %412 = vmatprep.subr.mxu0 0.0
        %413 = vmatpush1.msra.mxu0 %v362
        %414 = vmatprep.subr.mxu0 0.0
        %415 = vmatpush1.msra.mxu0 %v361
        %416 = vmatprep.subr.mxu0 0.0
        %417 = vmatpush2.msra.mxu0 0.0
        %418 = vmatprep.subr.mxu0 0.0
        %419 = vmatpush2.msra.mxu0 0.0
        %420 = vmatprep.subr.mxu0 0.0
        %421 = vmatpush2.msra.mxu0 0.0
        %422 = vmatprep.subr.mxu0 0.0
        %423 = vmatpush2.msra.mxu0 0.0
        %424 = vmatprep.subr.mxu0 0.0
        %425 = vmatpush2.msra.mxu0 0.0
        %426 = vmatprep.subr.mxu0 0.0
        %427 = vmatpush2.msra.mxu0 0.0
        %428 = vmatprep.subr.mxu0 0.0
        %429 = vmatpush2.msra.mxu0 0.0
        %430 = vmatprep.subr.mxu0 0.0
        %431 = vmatpush2.msra.mxu0 0.0
        %432 = vmatprep.subr.mxu0 0.0
        %433 = vmatpush2.msra.mxu0 0.0
        %434 = vmatprep.subr.mxu0 0.0
        %435 = vmatpush2.msra.mxu0 0.0
        %436 = vmatprep.subr.mxu0 0.0
        %437 = vmatpush2.msra.mxu0 0.0
        %438 = vmatprep.subr.mxu0 0.0
        %439 = vmatpush2.msra.mxu0 0.0
        %440 = vmatprep.subr.mxu0 0.0
        %441 = vmatpush2.msra.mxu0 0.0
        %442 = vmatprep.subr.mxu0 0.0
        %443 = vmatpush2.msra.mxu0 0.0
        %444 = vmatprep.subr.mxu0 0.0
        %445 = vmatpush2.msra.mxu0 0.0
        %446 = vmatprep.subr.mxu0 0.0
        %447 = vmatpush2.msra.mxu0 0.0
        %448 = vmatprep.mubr.f32.mxu0 0.0
        %449 = vmatmul.mubr.f32.gmra.mxu0 %v357
        %v450 = vpop.f32.mrf.mxu0
        %v451 = vadd.f32 %v382, %v450
        %v452 = vpop.f32.mrf.mxu0
        %453 = vmatprep.mubr.f32.mxu0 0.0
        %454 = vmatmul.mubr.f32.gmra.mxu0 %v358
        %v455 = vpop.f32.mrf.mxu0
        %v456 = vadd.f32 %v382, %v455
        %v457 = vpop.f32.mrf.mxu0
        %458 = vmatprep.mubr.f32.mxu0 0.0
        %459 = vmatmul.mubr.f32.gmra.mxu0 %v359
        %v460 = vpop.f32.mrf.mxu0
        %v461 = vadd.f32 %v382, %v460
        %v462 = vpop.f32.mrf.mxu0
        %463 = vmatprep.mubr.f32.mxu0 0.0
        %464 = vmatmul.mubr.f32.gmra.mxu0 %v360
        %v465 = vpop.f32.mrf.mxu0
        %v466 = vadd.f32 %v382, %v465
        %v467 = vpop.f32.mrf.mxu0
        %468 = vdwg.mxu0
        %vm469 = vcmask 64512
        %470 = vst.msk [vmem:[%s226] sm:$0xff] %vm469, %v451
        %471 = vst.msk [vmem:[%s226 + $0x8] sm:$0xff] %vm469, %v456
        %472 = vst.msk [vmem:[%s226 + $0x10] sm:$0xff] %vm469, %v461
        %473 = vst.msk [vmem:[%s226 + $0x18] sm:$0xff] %vm469, %v466
        %s474 = sand.u32 %s134, 1
        %s475 = sand.u32 %s134, 1
        %s476 = smul.addr %s475, 32
        %s477 = scalar_lea.vmem [#allocation2], %s476
        // Predicated region
        $region41: #{tpu_custom_call.1} parent=39 // pred_check
          %p478 = pneg %p144
        $region42: #{tpu_custom_call.1} parent=39 // pred_check_branch
          %480 = sbr.rel (%p478) target = $region44
        $region43: #{tpu_custom_call.1} parent=39 // pred_region
          %s481 = smul.u32 4, %s16
          %s482 = ssub.s32 13, %s481
          %p483 = scmp.lt.s32.totalorder %s482, 4
          %s484 = scalar_select %p483, %s482, 4
          %s485 = smul.u32 128, %s484
          %p486 = scmp.ne.s32.totalorder 0, %s485
          %s487 = smul.addr %s481, 8
          %s488 = scalar_lea.vmem %s5, %s487
          // Predicated region
          $region45: #{tpu_custom_call.1} parent=43 // pred_check
            %p489 = pneg %p486
          $region46: #{tpu_custom_call.1} parent=43 // pred_check_branch
            %491 = sbr.rel (%p489) target = $region48
          $region47: #{tpu_custom_call.1} parent=43 // pred_region
            // Predicated region
            $region49: #{tpu_custom_call.1} parent=47 // pred_check
              _
            $region50: #{tpu_custom_call.1} parent=47 // pred_check_branch
              %493 = sbr.rel (0) target = $region52
            $region51: #{tpu_custom_call.1} parent=47 // pred_region
              // Predicated region
              $region71: #{tpu_custom_call.1} parent=51 // pred_check
                _
              $region72: #{tpu_custom_call.1} parent=51 // pred_check_branch
                %549 = sbr.rel (0) target = $region74
              $region73: #{tpu_custom_call.1} parent=51 // pred_region
                %s550 = sshrl.u32 %s484, 2
                // While loop
                $region75: #{tpu_custom_call.1} parent=73 // loop_pre_header
                  _
                $region76: #{tpu_custom_call.1} parent=73 // loop_header
                  %s552 = sphi 0, %s554
                  %p553 = scmp.ge.s32.totalorder %s552, %s550
                  %s557 = sphi 0, %s570
                  %s558 = sphi %s477, %s573
                  %s559 = sphi %s488, %s574
                $region77: #{tpu_custom_call.1} parent=73 // loop_header_branch
                  %556 = sbr.rel (%p553) target = $region81
                $region78: #{tpu_custom_call.1} parent=73 // loop_body
                  %v560 = vld [vmem:[%s558] sm:$0xff]
                  %561 = vst [vmem:[%s559] sm:$0xff] %v560
                  %v562 = vld [vmem:[%s558 + $0x8] sm:$0xff]
                  %563 = vst [vmem:[%s559 + $0x8] sm:$0xff] %v562
                  %v564 = vld [vmem:[%s558 + $0x10] sm:$0xff]
                  %565 = vst [vmem:[%s559 + $0x10] sm:$0xff] %v564
                  %v566 = vld [vmem:[%s558 + $0x18] sm:$0xff]
                  %567 = vst [vmem:[%s559 + $0x18] sm:$0xff] %v566
                  %s568 = sadd.s32 1, %s557
                  %p569 = scmp.ge.s32.totalorder %s568, %s550
                  %s570 = scalar_select %p569, 0, %s568
                  %s571 = smul.u32 %s570, 32
                  %s572 = smul.u32 %s570, 32
                  %s573 = scalar_lea.vmem %s477, %s571 [#allocation2]
                  %s574 = scalar_lea.vmem %s488, %s572
                $region79: #{tpu_custom_call.1} parent=73 // loop_footer
                  %s554 = sadd.s32 %s552, 1
                $region80: #{tpu_custom_call.1} parent=73 // loop_footer_branch
                  %551 = sbr.rel target = $region76
                $region81: #{tpu_custom_call.1} parent=73 // loop_exit
                  _
                %s575 = sshrl.u32 %s484, 2
                %s576 = sand.u32 %s484, 3
                %s577 = smul.u32 %s575, 4
                %s578 = smul.u32 8, %s577
                %s579 = scalar_lea.vmem %s477, %s578 [#allocation2]
                %s580 = smul.u32 8, %s577
                %s581 = scalar_lea.vmem %s488, %s580
                // While loop
                $region82: #{tpu_custom_call.1} parent=73 // loop_pre_header
                  _
                $region83: #{tpu_custom_call.1} parent=73 // loop_header
                  %s583 = sphi 0, %s585
                  %p584 = scmp.ge.s32.totalorder %s583, %s576
                  %s588 = sphi 0, %s595
                  %s589 = sphi %s579, %s598
                  %s590 = sphi %s581, %s599
                $region84: #{tpu_custom_call.1} parent=73 // loop_header_branch
                  %587 = sbr.rel (%p584) target = $region88
                $region85: #{tpu_custom_call.1} parent=73 // loop_body
                  %v591 = vld [vmem:[%s589] sm:$0xff]
                  %592 = vst [vmem:[%s590] sm:$0xff] %v591
                  %s593 = sadd.s32 1, %s588
                  %p594 = scmp.ge.s32.totalorder %s593, %s576
                  %s595 = scalar_select %p594, 0, %s593
                  %s596 = smul.u32 %s595, 8
                  %s597 = smul.u32 %s595, 8
                  %s598 = scalar_lea.vmem %s579, %s596 [#allocation2]
                  %s599 = scalar_lea.vmem %s581, %s597
                $region86: #{tpu_custom_call.1} parent=73 // loop_footer
                  %s585 = sadd.s32 %s583, 1
                $region87: #{tpu_custom_call.1} parent=73 // loop_footer_branch
                  %582 = sbr.rel target = $region83
                $region88: #{tpu_custom_call.1} parent=73 // loop_exit
                  _
              $region74: #{tpu_custom_call.1} parent=51 // pred_fallthru
                _
              // Predicated region
              $region89: #{tpu_custom_call.1} parent=51 // pred_check
                _
              $region90: #{tpu_custom_call.1} parent=51 // pred_check_branch
                %601 = sbr.rel target = $region92
              $region91: #{tpu_custom_call.1} parent=51 // pred_region
                _
              $region92: #{tpu_custom_call.1} parent=51 // pred_fallthru
                _
            $region52: #{tpu_custom_call.1} parent=47 // pred_fallthru
              _
            // Predicated region
            $region53: #{tpu_custom_call.1} parent=47 // pred_check
              _
            $region54: #{tpu_custom_call.1} parent=47 // pred_check_branch
              %495 = sbr.rel target = $region56
            $region55: #{tpu_custom_call.1} parent=47 // pred_region
              %s497 = ssub.s32 256, 1
              %s498 = sshrl.u32 %s484, 2
              // While loop
              $region57: #{tpu_custom_call.1} parent=55 // loop_pre_header
                _
              $region58: #{tpu_custom_call.1} parent=55 // loop_header
                %s500 = sphi 0, %s502
                %p501 = scmp.ge.s32.totalorder %s500, %s498
                %s505 = sphi 0, %s518
                %s506 = sphi %s477, %s521
                %s507 = sphi %s488, %s522
              $region59: #{tpu_custom_call.1} parent=55 // loop_header_branch
                %504 = sbr.rel (%p501) target = $region63
              $region60: #{tpu_custom_call.1} parent=55 // loop_body
                %v508 = vld [vmem:[%s506] sm:%s497]
                %509 = vst [vmem:[%s507] sm:%s497] %v508
                %v510 = vld [vmem:[%s506 + $0x8] sm:%s497]
                %511 = vst [vmem:[%s507 + $0x8] sm:%s497] %v510
                %v512 = vld [vmem:[%s506 + $0x10] sm:%s497]
                %513 = vst [vmem:[%s507 + $0x10] sm:%s497] %v512
                %v514 = vld [vmem:[%s506 + $0x18] sm:%s497]
                %515 = vst [vmem:[%s507 + $0x18] sm:%s497] %v514
                %s516 = sadd.s32 1, %s505
                %p517 = scmp.ge.s32.totalorder %s516, %s498
                %s518 = scalar_select %p517, 0, %s516
                %s519 = smul.u32 %s518, 32
                %s520 = smul.u32 %s518, 32
                %s521 = scalar_lea.vmem %s477, %s519 [#allocation2]
                %s522 = scalar_lea.vmem %s488, %s520
              $region61: #{tpu_custom_call.1} parent=55 // loop_footer
                %s502 = sadd.s32 %s500, 1
              $region62: #{tpu_custom_call.1} parent=55 // loop_footer_branch
                %499 = sbr.rel target = $region58
              $region63: #{tpu_custom_call.1} parent=55 // loop_exit
                _
              %s523 = sshrl.u32 %s484, 2
              %s524 = sand.u32 %s484, 3
              %s525 = smul.u32 %s523, 4
              %s526 = smul.u32 8, %s525
              %s527 = scalar_lea.vmem %s477, %s526 [#allocation2]
              %s528 = smul.u32 8, %s525
              %s529 = scalar_lea.vmem %s488, %s528
              // While loop
              $region64: #{tpu_custom_call.1} parent=55 // loop_pre_header
                _
              $region65: #{tpu_custom_call.1} parent=55 // loop_header
                %s531 = sphi 0, %s533
                %p532 = scmp.ge.s32.totalorder %s531, %s524
                %s536 = sphi 0, %s543
                %s537 = sphi %s527, %s546
                %s538 = sphi %s529, %s547
              $region66: #{tpu_custom_call.1} parent=55 // loop_header_branch
                %535 = sbr.rel (%p532) target = $region70
              $region67: #{tpu_custom_call.1} parent=55 // loop_body
                %v539 = vld [vmem:[%s537] sm:%s497]
                %540 = vst [vmem:[%s538] sm:%s497] %v539
                %s541 = sadd.s32 1, %s536
                %p542 = scmp.ge.s32.totalorder %s541, %s524
                %s543 = scalar_select %p542, 0, %s541
                %s544 = smul.u32 %s543, 8
                %s545 = smul.u32 %s543, 8
                %s546 = scalar_lea.vmem %s527, %s544 [#allocation2]
                %s547 = scalar_lea.vmem %s529, %s545
              $region68: #{tpu_custom_call.1} parent=55 // loop_footer
                %s533 = sadd.s32 %s531, 1
              $region69: #{tpu_custom_call.1} parent=55 // loop_footer_branch
                %530 = sbr.rel target = $region65
              $region70: #{tpu_custom_call.1} parent=55 // loop_exit
                _
            $region56: #{tpu_custom_call.1} parent=47 // pred_fallthru
              _
          $region48: #{tpu_custom_call.1} parent=43 // pred_fallthru
            _
          %602 = vnop
        $region44: #{tpu_custom_call.1} parent=39 // pred_fallthru
          _
      $region40: #{tpu_custom_call.1} parent=5 // pred_fallthru
        _
      %p603 = scmp.le.s32.totalorder 2, %s11
      // Predicated region
      $region93: #{tpu_custom_call.1} parent=5 // pred_check
        %p604 = pneg %p603
      $region94: #{tpu_custom_call.1} parent=5 // pred_check_branch
        %606 = sbr.rel (%p604) target = $region96
      $region95: #{tpu_custom_call.1} parent=5 // pred_region
        %s607 = ssub.s32 %s11, 2
        // Predicated region
        $region97: #{tpu_custom_call.1} parent=95 // pred_check
          %p608 = pneg %p150
        $region98: #{tpu_custom_call.1} parent=95 // pred_check_branch
          %610 = sbr.rel (%p608) target = $region100
        $region99: #{tpu_custom_call.1} parent=95 // pred_region
          %s611 = sand.u32 %s135, 1
          %s612 = sand.u32 %s135, 1
          %s613 = smul.addr %s612, 32
          %s614 = scalar_lea.vmem [#allocation2], %s613
        $region100: #{tpu_custom_call.1} parent=95 // pred_fallthru
          _
      $region96: #{tpu_custom_call.1} parent=5 // pred_fallthru
        _
    $region6: #{tpu_custom_call.1} parent=1 // loop_footer
      %s15 = sadd.s32 1, %s11
    $region7: #{tpu_custom_call.1} parent=1 // loop_footer_branch
      %10 = sbr.rel target = $region3
    $region8: #{tpu_custom_call.1} parent=1 // loop_exit
      _

</llo_original>
